<compile_context>
chip_gen: v5e
topology: v5e:2x2
jax: 0.10.0
libtpu: 0.0.40
codegen_flags: <defaults>
</compile_context>

<pallas_src>
import jax
import jax.numpy as jnp
from jax.experimental import pallas as pl
from jax.experimental.pallas import tpu as pltpu


def _subpixel_conv_kernel(xm_ref, xh_ref, w_ref, b_ref, a_ref, o_ref):
    """Conv3x3 (im2col, one K=9C MXU matmul) + bias + PReLU for one row tile."""
    # xm_ref: (TH, W+2, C)  padded-input rows [t*TH, t*TH+TH)        (bf16)
    # xh_ref: (2,  W+2, C)  bottom-halo rows  [t*TH+TH, t*TH+TH+2)   (bf16)
    # w_ref : (9C, Co)      weights, row index = (dy*3+dx)*C + c     (bf16)
    # b_ref : (1, Co)       bias                                     (f32)
    # a_ref : (1, Co)       PReLU slope per conv-output channel      (f32)
    # o_ref : (TH, W, Co)   conv + bias + PReLU output tile          (bf16)
    TH, W, Co = o_ref.shape
    C = xm_ref.shape[-1]

    # (TH+2, W+2, C) window for this tile: main rows + 2-row bottom halo.
    # Concat is along the outermost dim -> buffer placement, no lane relayout.
    xw = jnp.concatenate([xm_ref[...], xh_ref[...]], axis=0)

    # im2col: 9 statically shifted views concatenated along channels, then a
    # single K=9C matmul (one MXU pass instead of 9 depth-starved K=C passes).
    views = [xw[dy:dy + TH, dx:dx + W, :] for dy in range(3) for dx in range(3)]
    patches = jnp.concatenate(views, axis=-1).reshape(TH * W, 9 * C)

    acc = jnp.dot(patches, w_ref[...], preferred_element_type=jnp.float32)

    # f32 epilogue (safe on v5e's VPU); bf16 only at the store.
    acc = acc + b_ref[...]
    out = jnp.where(acc > 0, acc, acc * a_ref[...])
    o_ref[...] = out.reshape(TH, W, Co).astype(o_ref.dtype)


def _round_up(x, m):
    return (x + m - 1) // m * m


def _vmem_budget_bytes():
    """~85% of this generation's VMEM (v5e/v6e: 128 MiB, v7x: 64 MiB per TC)."""
    cap = 64 * 1024 * 1024
    try:
        info = pltpu.get_tpu_info()
        cap = int(getattr(info, "vmem_capacity_bytes", cap) or cap)
    except Exception:
        pass
    return int(cap * 0.85)


def _choose_row_tile(H, W, C, Co, budget):
    """Largest multiple-of-8 row tile whose working set fits `budget` bytes,
    keeping >=2 row tiles whenever H allows it (v7x has 2 TensorCores)."""
    fixed = (2 * 9 * C * Co * 2          # weights (bf16, double-buffered)
             + 4 * Co * 4                # bias + alpha (f32)
             + 2 * 2 * (W + 2) * C * 2)  # halo blocks (bf16, double-buffered)
    per_row = ((W + 2) * C * 2 * 2       # main input block (bf16, x2 buffers)
               + (W + 2) * C * 2         # concatenated window copy
               + W * 9 * C * 2           # im2col patch matrix (bf16)
               + 2 * W * Co * 4          # f32 accumulator + epilogue temps
               + W * Co * 2 * 2)         # output block (bf16, x2 buffers)
    avail = max(budget - fixed, 8 * per_row)
    th = max(8, min((avail // per_row) // 8 * 8, 256))
    h8 = _round_up(H, 8)
    th = min(th, h8)
    if th >= h8 and h8 > 8:              # ensure at least 2 row tiles
        th = _round_up((H + 1) // 2, 8)
    n_tiles = (H + th - 1) // th
    th = _round_up((H + n_tiles - 1) // n_tiles, 8)   # rebalance tile sizes
    n_tiles = (H + th - 1) // th
    return int(th), int(n_tiles)


def subpixel_convolution_layer(x_nchw, weight, bias, alpha,
                               compute_dtype=jnp.bfloat16):
    """Forward pass of SubpixelConvolutionLayer.

    x_nchw: (N, C, H, W)  f32
    weight: (4C, C, 3, 3) f32 (PyTorch Conv2d layout)
    bias:   (4C,)         f32
    alpha:  (C,)          f32 (PReLU per-channel slopes)
    returns (N, C, 2H, 2W) f32
    """
    N, C, H, W = x_nchw.shape
    Co = 4 * C
    assert weight.shape == (Co, C, 3, 3)
    assert bias.shape == (Co,) and alpha.shape == (C,)

    budget = _vmem_budget_bytes()
    TH, n_tiles = _choose_row_tile(H, W, C, Co, budget)
    H_pad = TH * n_tiles

    # ---- glue: input layout transform (one fused XLA transpose+pad pass) ----
    x_nhwc = jnp.transpose(x_nchw, (0, 2, 3, 1))                         # NHWC
    x_pad = jnp.pad(x_nhwc, ((0, 0), (1, 1 + H_pad - H), (1, 1), (0, 0)))
    x_pad = x_pad.astype(compute_dtype)            # (N, H_pad+2, W+2, C), bf16
    # (Co, C, 3, 3) -> (3, 3, C, Co) -> (9C, Co); row index = (dy*3+dx)*C + c
    w_mat = jnp.transpose(weight, (2, 3, 1, 0)).reshape(9 * C, Co)
    w_mat = w_mat.astype(compute_dtype)
    b2 = bias.reshape(1, Co).astype(jnp.float32)
    # PReLU after PixelShuffle acts on shuffled channel co // 4.
    alpha_exp = jnp.repeat(alpha, 4).reshape(1, Co).astype(jnp.float32)

    flops = 2 * N * H_pad * W * (9 * C) * Co
    bytes_accessed = (N * (H_pad + 2) * (W + 2) * C * 2        # activations
                      + 9 * C * Co * 2 + 8 * Co                # weights/bias
                      + N * H_pad * W * Co * 2)                # bf16 conv out

    # ---- Pallas kernel: conv (im2col, one MXU matmul) + bias + PReLU ----
    conv_out = pl.pallas_call(
        _subpixel_conv_kernel,
        out_shape=jax.ShapeDtypeStruct((N, H_pad, W, Co), jnp.bfloat16),
        grid_spec=pltpu.PrefetchScalarGridSpec(
            num_scalar_prefetch=0,
            grid=(N, n_tiles),
            in_specs=[
                # Main TH-row block of the padded image for this row tile.
                pl.BlockSpec((None, TH, W + 2, C), lambda n, t: (n, t, 0, 0)),
                # 2-row bottom halo of the same array (2-row blocks; TH is a
                # multiple of 8, so (t+1)*TH/2 is an exact block index).
                pl.BlockSpec((None, 2, W + 2, C),
                             lambda n, t: (n, (t + 1) * (TH // 2), 0, 0)),
                pl.BlockSpec((9 * C, Co), lambda n, t: (0, 0)),
                pl.BlockSpec((1, Co), lambda n, t: (0, 0)),
                pl.BlockSpec((1, Co), lambda n, t: (0, 0)),
            ],
            out_specs=pl.BlockSpec((None, TH, W, Co), lambda n, t: (n, t, 0, 0)),
        ),
        compiler_params=pltpu.CompilerParams(
            dimension_semantics=("parallel", "parallel"),
            vmem_limit_bytes=budget,
        ),
        cost_estimate=pl.CostEstimate(
            flops=flops, transcendentals=0, bytes_accessed=bytes_accessed),
    )(x_pad, x_pad, w_mat, b2, alpha_exp)

    # ---- glue: PixelShuffle (r=2) + NCHW restore + f32 upcast ----
    # The module interface is NCHW, so exactly one transpose pass over the
    # upsampled tensor is unavoidable; XLA fuses slice + reshape + transpose +
    # cast into that single pass (bf16 read, f32 write).
    # PyTorch: out[n, c, 2h+i, 2w+j] = conv[n, 4c + 2i + j, h, w]
    y = conv_out[:, :H] if H_pad != H else conv_out
    y = y.reshape(N, H, W, C, 2, 2)                  # (n, h, w, c, i, j)
    y = jnp.transpose(y, (0, 3, 1, 4, 2, 5))         # (n, c, h, i, w, j)
    y = y.reshape(N, C, 2 * H, 2 * W)
    return y.astype(jnp.float32)


if __name__ == "__main__":
    key = jax.random.PRNGKey(0)
    N, C, H, W = 2, 4, 16, 16

    k_x, k_w, k_b = jax.random.split(key, 3)
    x = jax.random.normal(k_x, (N, C, H, W), dtype=jnp.float32)
    # Deterministic synthetic parameters (shapes from the module's __init__).
    weight = 0.1 * jax.random.normal(k_w, (4 * C, C, 3, 3), dtype=jnp.float32)
    bias = 0.05 * jax.random.normal(k_b, (4 * C,), dtype=jnp.float32)
    alpha = 0.25 * jnp.ones((C,), dtype=jnp.float32)   # PyTorch PReLU default

    out = subpixel_convolution_layer(x, weight, bias, alpha)
    jax.block_until_ready(out)
    assert out.shape == (N, C, 2 * H, 2 * W)
    assert out.dtype == jnp.float32

    # Plain-JAX reference (same math, no Pallas).
    def reference(xr, wr):
        x_p = jnp.pad(xr, ((0, 0), (0, 0), (1, 1), (1, 1)))
        conv = jax.lax.conv_general_dilated(
            x_p, wr, window_strides=(1, 1), padding="VALID",
            dimension_numbers=("NCHW", "OIHW", "NCHW"),
            precision=jax.lax.Precision.HIGHEST) + bias[None, :, None, None]
        ps = conv.reshape(N, C, 2, 2, H, W)
        ps = jnp.transpose(ps, (0, 1, 4, 2, 5, 3)).reshape(N, C, 2 * H, 2 * W)
        return jnp.where(ps > 0, ps, ps * alpha[None, :, None, None])

    # Tight check: reference fed the same bf16-rounded activations/weights the
    # MXU sees (f32 accumulation); remaining diffs are accumulation order plus
    # the bf16 output-store rounding.
    ref_bf16 = reference(x.astype(jnp.bfloat16).astype(jnp.float32),
                         weight.astype(jnp.bfloat16).astype(jnp.float32))
    assert jnp.allclose(out, ref_bf16, atol=2e-2, rtol=2e-2)

    # Loose check against the full-f32 reference (bf16 input quantization).
    ref_f32 = reference(x, weight)
    assert jnp.allclose(out, ref_f32, atol=5e-2, rtol=5e-2)

    print("KERNEL_OK")
</pallas_src>

<mosaic_0001>
module attributes {stable_mosaic.version = 11 : i64} {
  func.func @_subpixel_conv_kernel(%arg0: i32, %arg1: i32, %arg2: memref<1x8x18x4xbf16, #tpu.memory_space<vmem>>, %arg3: memref<1x2x18x4xbf16, #tpu.memory_space<vmem>>, %arg4: memref<36x16xbf16, #tpu.memory_space<vmem>>, %arg5: memref<1x16xf32, #tpu.memory_space<vmem>>, %arg6: memref<1x16xf32, #tpu.memory_space<vmem>>, %arg7: memref<1x8x16x16xbf16, #tpu.memory_space<vmem>>) attributes {dimension_semantics = [#tpu.dimension_semantics<parallel>, #tpu.dimension_semantics<parallel>], iteration_bounds = array<i64: 2, 2>, scalar_prefetch = 0 : i64, scratch_operands = 0 : i64, tpu.core_type = #tpu.core_type<tc>, window_params = [{transform_indices = @transform_0, window_bounds = array<i64: 1, 8, 18, 4>}, {transform_indices = @transform_1, window_bounds = array<i64: 1, 2, 18, 4>}, {pipeline_mode = #tpu.pipeline_mode<synchronous>, transform_indices = @transform_2, window_bounds = array<i64: 36, 16>}, {pipeline_mode = #tpu.pipeline_mode<synchronous>, transform_indices = @transform_3, window_bounds = array<i64: 1, 16>}, {pipeline_mode = #tpu.pipeline_mode<synchronous>, transform_indices = @transform_4, window_bounds = array<i64: 1, 16>}, {transform_indices = @transform_5, window_bounds = array<i64: 1, 8, 16, 16>}]} {
    %c0 = arith.constant 0 : index
    %c0_0 = arith.constant 0 : index
    %c0_1 = arith.constant 0 : index
    %c0_2 = arith.constant 0 : index
    %0 = vector.load %arg2[%c0, %c0_0, %c0_1, %c0_2] : memref<1x8x18x4xbf16, #tpu.memory_space<vmem>>, vector<1x8x18x4xbf16>
    %1 = vector.shape_cast %0 : vector<1x8x18x4xbf16> to vector<8x18x4xbf16>
    %c0_3 = arith.constant 0 : index
    %c0_4 = arith.constant 0 : index
    %c0_5 = arith.constant 0 : index
    %c0_6 = arith.constant 0 : index
    %2 = vector.load %arg3[%c0_3, %c0_4, %c0_5, %c0_6] : memref<1x2x18x4xbf16, #tpu.memory_space<vmem>>, vector<1x2x18x4xbf16>
    %3 = vector.shape_cast %2 : vector<1x2x18x4xbf16> to vector<2x18x4xbf16>
    %4 = tpu.concatenate %1, %3 in 0 : vector<8x18x4xbf16>, vector<2x18x4xbf16> -> vector<10x18x4xbf16>
    %5 = vector.extract_strided_slice %4 {offsets = [0, 0, 0], sizes = [8, 16, 4], strides = [1, 1, 1]} : vector<10x18x4xbf16> to vector<8x16x4xbf16>
    %6 = vector.extract_strided_slice %4 {offsets = [0, 1, 0], sizes = [8, 16, 4], strides = [1, 1, 1]} : vector<10x18x4xbf16> to vector<8x16x4xbf16>
    %7 = vector.extract_strided_slice %4 {offsets = [0, 2, 0], sizes = [8, 16, 4], strides = [1, 1, 1]} : vector<10x18x4xbf16> to vector<8x16x4xbf16>
    %8 = vector.extract_strided_slice %4 {offsets = [1, 0, 0], sizes = [8, 16, 4], strides = [1, 1, 1]} : vector<10x18x4xbf16> to vector<8x16x4xbf16>
    %9 = vector.extract_strided_slice %4 {offsets = [1, 1, 0], sizes = [8, 16, 4], strides = [1, 1, 1]} : vector<10x18x4xbf16> to vector<8x16x4xbf16>
    %10 = vector.extract_strided_slice %4 {offsets = [1, 2, 0], sizes = [8, 16, 4], strides = [1, 1, 1]} : vector<10x18x4xbf16> to vector<8x16x4xbf16>
    %11 = vector.extract_strided_slice %4 {offsets = [2, 0, 0], sizes = [8, 16, 4], strides = [1, 1, 1]} : vector<10x18x4xbf16> to vector<8x16x4xbf16>
    %12 = vector.extract_strided_slice %4 {offsets = [2, 1, 0], sizes = [8, 16, 4], strides = [1, 1, 1]} : vector<10x18x4xbf16> to vector<8x16x4xbf16>
    %13 = vector.extract_strided_slice %4 {offsets = [2, 2, 0], sizes = [8, 16, 4], strides = [1, 1, 1]} : vector<10x18x4xbf16> to vector<8x16x4xbf16>
    %14 = tpu.concatenate %5, %6, %7, %8, %9, %10, %11, %12, %13 in 2 : vector<8x16x4xbf16>, vector<8x16x4xbf16>, vector<8x16x4xbf16>, vector<8x16x4xbf16>, vector<8x16x4xbf16>, vector<8x16x4xbf16>, vector<8x16x4xbf16>, vector<8x16x4xbf16>, vector<8x16x4xbf16> -> vector<8x16x36xbf16>
    %15 = vector.shape_cast %14 : vector<8x16x36xbf16> to vector<128x36xbf16>
    %c0_7 = arith.constant 0 : index
    %c0_8 = arith.constant 0 : index
    %16 = vector.load %arg4[%c0_7, %c0_8] : memref<36x16xbf16, #tpu.memory_space<vmem>>, vector<36x16xbf16>
    %cst = arith.constant dense<0.000000e+00> : vector<128x16xf32>
    %17 = tpu.matmul %15, %16, %cst {dimension_numbers = #tpu.dot_dimension_numbers<[1], [0], [0], [1], [0, 0, 1, 1], [], []>} : vector<128x36xbf16>, vector<36x16xbf16>, vector<128x16xf32> -> vector<128x16xf32>
    %c0_9 = arith.constant 0 : index
    %c0_10 = arith.constant 0 : index
    %18 = vector.load %arg5[%c0_9, %c0_10] : memref<1x16xf32, #tpu.memory_space<vmem>>, vector<1x16xf32>
    %19 = vector.broadcast %18 : vector<1x16xf32> to vector<128x16xf32>
    %20 = arith.addf %17, %19 : vector<128x16xf32>
    %cst_11 = arith.constant 0.000000e+00 : f32
    %21 = vector.broadcast %cst_11 : f32 to vector<128x16xf32>
    %22 = arith.cmpf ogt, %20, %21 : vector<128x16xf32>
    %c0_12 = arith.constant 0 : index
    %c0_13 = arith.constant 0 : index
    %23 = vector.load %arg6[%c0_12, %c0_13] : memref<1x16xf32, #tpu.memory_space<vmem>>, vector<1x16xf32>
    %24 = vector.broadcast %23 : vector<1x16xf32> to vector<128x16xf32>
    %25 = arith.mulf %20, %24 : vector<128x16xf32>
    %26 = arith.select %22, %20, %25 : vector<128x16xi1>, vector<128x16xf32>
    %27 = vector.shape_cast %26 : vector<128x16xf32> to vector<8x16x16xf32>
    %28 = arith.truncf %27 : vector<8x16x16xf32> to vector<8x16x16xbf16>
    %c0_14 = arith.constant 0 : index
    %c0_15 = arith.constant 0 : index
    %c0_16 = arith.constant 0 : index
    %c0_17 = arith.constant 0 : index
    %29 = vector.load %arg7[%c0_14, %c0_15, %c0_16, %c0_17] : memref<1x8x16x16xbf16, #tpu.memory_space<vmem>>, vector<1x8x16x16xbf16>
    %30 = vector.shape_cast %29 : vector<1x8x16x16xbf16> to vector<8x16x16xbf16>
    %31 = vector.shape_cast %28 : vector<8x16x16xbf16> to vector<1x8x16x16xbf16>
    tpu.vector_store %arg7[%c0_14, %c0_15, %c0_16, %c0_17], %31 {strides = array<i32>} : memref<1x8x16x16xbf16, #tpu.memory_space<vmem>>, vector<1x8x16x16xbf16>,
    return
  }
  func.func @transform_0(%arg0: i32, %arg1: i32) -> (i32, i32, i32, i32) {
    %c0_i32 = arith.constant 0 : i32
    %c0_i32_0 = arith.constant 0 : i32
    %c0_i32_1 = arith.constant 0 : i32
    return %arg0, %arg1, %c0_i32, %c0_i32_0 : i32, i32, i32, i32
  }
  func.func @transform_1(%arg0: i32, %arg1: i32) -> (i32, i32, i32, i32) {
    %c1_i32 = arith.constant 1 : i32
    %0 = arith.addi %arg1, %c1_i32 : i32
    %c4_i32 = arith.constant 4 : i32
    %1 = arith.muli %0, %c4_i32 : i32
    %c0_i32 = arith.constant 0 : i32
    %c0_i32_0 = arith.constant 0 : i32
    %c0_i32_1 = arith.constant 0 : i32
    return %arg0, %1, %c0_i32, %c0_i32_0 : i32, i32, i32, i32
  }
  func.func @transform_2(%arg0: i32, %arg1: i32) -> (i32, i32) {
    %c0_i32 = arith.constant 0 : i32
    %c0_i32_0 = arith.constant 0 : i32
    %c0_i32_1 = arith.constant 0 : i32
    return %c0_i32, %c0_i32_0 : i32, i32
  }
  func.func @transform_3(%arg0: i32, %arg1: i32) -> (i32, i32) {
    %c0_i32 = arith.constant 0 : i32
    %c0_i32_0 = arith.constant 0 : i32
    %c0_i32_1 = arith.constant 0 : i32
    return %c0_i32, %c0_i32_0 : i32, i32
  }
  func.func @transform_4(%arg0: i32, %arg1: i32) -> (i32, i32) {
    %c0_i32 = arith.constant 0 : i32
    %c0_i32_0 = arith.constant 0 : i32
    %c0_i32_1 = arith.constant 0 : i32
    return %c0_i32, %c0_i32_0 : i32, i32
  }
  func.func @transform_5(%arg0: i32, %arg1: i32) -> (i32, i32, i32, i32) {
    %c0_i32 = arith.constant 0 : i32
    %c0_i32_0 = arith.constant 0 : i32
    %c0_i32_1 = arith.constant 0 : i32
    return %arg0, %arg1, %c0_i32, %c0_i32_0 : i32, i32, i32, i32
  }
}

</mosaic_0001>

<llo_original>
// kernel: tpu_custom_call.1
$region0: #{tpu_custom_call.1}
  #allocation0 [shape = 'u32[]', space=smem, size = 0x4, offset = 0x4, fixed_abs, tag = 'smem constant byte address 0x4 - core index']
  #allocation1 [shape = 'u32[72,128]{1,0:T(1,128)}', space=vmem, size = 0x9000, scoped, tag = 'internal scratch']
  %s0 = inlined_call_operand.vmem [shape: bf16[2,18,18,4], index: 0, kind: input, shape index: {}]
  %s1 = inlined_call_operand.vmem [shape: bf16[2,18,18,4], index: 1, kind: input, shape index: {}]
  %s2 = inlined_call_operand.vmem [shape: bf16[36,16], index: 2, kind: input, shape index: {}]
  %s3 = inlined_call_operand.vmem [shape: f32[1,16], index: 3, kind: input, shape index: {}]
  %s4 = inlined_call_operand.vmem [shape: f32[1,16], index: 4, kind: input, shape index: {}]
  %s5 = inlined_call_operand.hbm [shape: bf16[2,16,16,16], index: 5, kind: output, shape index: {}]
  %s6 = sld [smem:[#allocation0]]
  $region53: #{tpu_custom_call.1} parent=0
    _
  %s8 = ssub.s32 1, %s6
  %s9 = scalar_select 0, %s8, %s6
  $region1: #{tpu_custom_call.1} parent=0
    #allocation2 [shape = 'u8[65536]{0}', space=vmem, size = 0x10000, scoped, tag = 'output window, operand 0']
    #allocation3 [shape = 's32[2]{0}', space=sflag, size = 0x8, scoped, tag = 'scoped memory for tpu_custom_call.1']
    %10 = vsyncpa [#allocation3], 0
    %s11 = scalar_lea.sflag [#allocation3], 1
    %12 = vsyncpa %s11, 0
    loop: start=0, step=1, limit=6
    $region2: #{tpu_custom_call.1} parent=1 // loop_pre_header
      _
    $region3: #{tpu_custom_call.1} parent=1 // loop_header
      %s14 = sphi 0, %s18
      %p15 = scmp.ge.s32.totalorder %s14, 6
      %s21 = sphi 0, %s33
      %s22 = sphi 0, %s29
      %s23 = sphi 0, %s21
      %s24 = sphi 0, %s22
      %s25 = sphi 0, %s23
      %s26 = sphi 0, %s24
      %s38 = sphi 0, %s40
      %s41 = sphi 0, %s38
      %s42 = sphi 0, %s41
      %s58 = sphi 0, %s42
      %s70 = sphi 0, %s72
      %s73 = sphi 0, %s70
      %s74 = sphi 0, %s73
      %s90 = sphi 0, %s74
      %s94 = sphi 0, %s94
      %s96 = sphi 0, %s94
      %s97 = sphi 0, %s96
      %s111 = sphi 0, %s97
      %s115 = sphi 0, %s115
      %s117 = sphi 0, %s115
      %s118 = sphi 0, %s117
      %s132 = sphi 0, %s118
      %s136 = sphi 0, %s136
      %s138 = sphi 0, %s136
      %s139 = sphi 0, %s138
      %s153 = sphi 0, %s139
      %s161 = sphi 0, %s163
      %s164 = sphi 0, %s161
      %s165 = sphi 0, %s164
      %s181 = sphi 0, %s165
    $region4: #{tpu_custom_call.1} parent=1 // loop_header_branch
      %17 = sbr.rel (%p15) target = $region8
    $region5: #{tpu_custom_call.1} parent=1 // loop_body
      %s19 = ssub.s32 %s14, 1
      %s20 = ssub.s32 %s14, 2
      %s27 = sadd.s32 1, %s22
      %p28 = scmp.ge.s32.totalorder %s27, 2
      %s29 = scalar_select %p28, 0, %s27
      %s30 = sadd.s32 1, %s21
      %s31 = scalar_select %p28, %s30, %s21
      %p32 = scmp.ge.s32.totalorder %s31, 2
      %s33 = scalar_select %p32, 0, %s31
      %s34 = ssub.s32 %s21, %s33
      %s35 = ssub.s32 %s22, %s29
      %s36 = sor.u32 %s34, %s35
      %p37 = scmp.eq.s32.totalorder %s36, 0
      %s39 = sadd.s32 %s38, 1
      %s40 = scalar_select %p37, %s38, %s39
      %p43 = pneg %p37
      %p44 = scmp.eq.s32.totalorder %s14, 3
      %p45 = por %p43, %p44
      %p46 = scmp.ne.s32.totalorder %s38, %s41
      %p47 = scmp.eq.s32.totalorder %s14, 0
      %p48 = por %p46, %p47
      %p49 = scmp.ne.s32.totalorder %s38, %s41
      %p50 = scmp.eq.s32.totalorder %s19, 3
      %p51 = por %p49, %p50
      %p52 = scmp.ne.s32.totalorder %s41, %s42
      %p53 = scmp.eq.s32.totalorder %s19, 0
      %p54 = por %p52, %p53
      %p55 = scmp.ne.s32.totalorder %s41, %s42
      %p56 = scmp.eq.s32.totalorder %s20, 3
      %p57 = por %p55, %p56
      %p59 = scmp.ne.s32.totalorder %s42, %s58
      %p60 = scmp.eq.s32.totalorder %s20, 0
      %p61 = por %p59, %p60
      %s62 = sadd.s32 %s22, 1
      %s63 = smul.u32 %s62, 4
      %s64 = sadd.s32 %s29, 1
      %s65 = smul.u32 %s64, 4
      %s66 = ssub.s32 %s21, %s33
      %s67 = ssub.s32 %s63, %s65
      %s68 = sor.u32 %s66, %s67
      %p69 = scmp.eq.s32.totalorder %s68, 0
      %s71 = sadd.s32 %s70, 1
      %s72 = scalar_select %p69, %s70, %s71
      %p75 = pneg %p69
      %p76 = scmp.eq.s32.totalorder %s14, 3
      %p77 = por %p75, %p76
      %p78 = scmp.ne.s32.totalorder %s70, %s73
      %p79 = scmp.eq.s32.totalorder %s14, 0
      %p80 = por %p78, %p79
      %p81 = scmp.ne.s32.totalorder %s70, %s73
      %p82 = scmp.eq.s32.totalorder %s19, 3
      %p83 = por %p81, %p82
      %p84 = scmp.ne.s32.totalorder %s73, %s74
      %p85 = scmp.eq.s32.totalorder %s19, 0
      %p86 = por %p84, %p85
      %p87 = scmp.ne.s32.totalorder %s73, %s74
      %p88 = scmp.eq.s32.totalorder %s20, 3
      %p89 = por %p87, %p88
      %p91 = scmp.ne.s32.totalorder %s74, %s90
      %p92 = scmp.eq.s32.totalorder %s20, 0
      %p93 = por %p91, %p92
      %s95 = sadd.s32 %s94, 1
      %p98 = scmp.eq.s32.totalorder %s14, 3
      %p99 = scmp.ne.s32.totalorder %s94, %s96
      %p100 = scmp.eq.s32.totalorder %s14, 0
      %p101 = por %p99, %p100
      %p102 = scmp.ne.s32.totalorder %s94, %s96
      %p103 = scmp.eq.s32.totalorder %s19, 3
      %p104 = por %p102, %p103
      %p105 = scmp.ne.s32.totalorder %s96, %s97
      %p106 = scmp.eq.s32.totalorder %s19, 0
      %p107 = por %p105, %p106
      %p108 = scmp.ne.s32.totalorder %s96, %s97
      %p109 = scmp.eq.s32.totalorder %s20, 3
      %p110 = por %p108, %p109
      %p112 = scmp.ne.s32.totalorder %s97, %s111
      %p113 = scmp.eq.s32.totalorder %s20, 0
      %p114 = por %p112, %p113
      %s116 = sadd.s32 %s115, 1
      %p119 = scmp.eq.s32.totalorder %s14, 3
      %p120 = scmp.ne.s32.totalorder %s115, %s117
      %p121 = scmp.eq.s32.totalorder %s14, 0
      %p122 = por %p120, %p121
      %p123 = scmp.ne.s32.totalorder %s115, %s117
      %p124 = scmp.eq.s32.totalorder %s19, 3
      %p125 = por %p123, %p124
      %p126 = scmp.ne.s32.totalorder %s117, %s118
      %p127 = scmp.eq.s32.totalorder %s19, 0
      %p128 = por %p126, %p127
      %p129 = scmp.ne.s32.totalorder %s117, %s118
      %p130 = scmp.eq.s32.totalorder %s20, 3
      %p131 = por %p129, %p130
      %p133 = scmp.ne.s32.totalorder %s118, %s132
      %p134 = scmp.eq.s32.totalorder %s20, 0
      %p135 = por %p133, %p134
      %s137 = sadd.s32 %s136, 1
      %p140 = scmp.eq.s32.totalorder %s14, 3
      %p141 = scmp.ne.s32.totalorder %s136, %s138
      %p142 = scmp.eq.s32.totalorder %s14, 0
      %p143 = por %p141, %p142
      %p144 = scmp.ne.s32.totalorder %s136, %s138
      %p145 = scmp.eq.s32.totalorder %s19, 3
      %p146 = por %p144, %p145
      %p147 = scmp.ne.s32.totalorder %s138, %s139
      %p148 = scmp.eq.s32.totalorder %s19, 0
      %p149 = por %p147, %p148
      %p150 = scmp.ne.s32.totalorder %s138, %s139
      %p151 = scmp.eq.s32.totalorder %s20, 3
      %p152 = por %p150, %p151
      %p154 = scmp.ne.s32.totalorder %s139, %s153
      %p155 = scmp.eq.s32.totalorder %s20, 0
      %p156 = por %p154, %p155
      %s157 = ssub.s32 %s21, %s33
      %s158 = ssub.s32 %s22, %s29
      %s159 = sor.u32 %s157, %s158
      %p160 = scmp.eq.s32.totalorder %s159, 0
      %s162 = sadd.s32 %s161, 1
      %s163 = scalar_select %p160, %s161, %s162
      %p166 = pneg %p160
      %p167 = scmp.eq.s32.totalorder %s14, 3
      %p168 = por %p166, %p167
      %p169 = scmp.ne.s32.totalorder %s161, %s164
      %p170 = scmp.eq.s32.totalorder %s14, 0
      %p171 = por %p169, %p170
      %p172 = scmp.ne.s32.totalorder %s161, %s164
      %p173 = scmp.eq.s32.totalorder %s19, 3
      %p174 = por %p172, %p173
      %p175 = scmp.ne.s32.totalorder %s164, %s165
      %p176 = scmp.eq.s32.totalorder %s19, 0
      %p177 = por %p175, %p176
      %p178 = scmp.ne.s32.totalorder %s164, %s165
      %p179 = scmp.eq.s32.totalorder %s20, 3
      %p180 = por %p178, %p179
      %p182 = scmp.ne.s32.totalorder %s165, %s181
      %p183 = scmp.eq.s32.totalorder %s20, 0
      %p184 = por %p182, %p183
      %p185 = scmp.le.s32.totalorder 1, %s14
      %p186 = scmp.lt.s32.totalorder %s14, 5
      %p187 = pnand %p185, %p186
      %p188 = pneg %p187
      // Predicated region
      $region9: #{tpu_custom_call.1} parent=5 // pred_check
        _
      $region10: #{tpu_custom_call.1} parent=5 // pred_check_branch
        %190 = sbr.rel (%p187) target = $region12
      $region11: #{tpu_custom_call.1} parent=5 // pred_region
        %s191 = ssub.s32 %s14, 1
        // Predicated region
        $region13: #{tpu_custom_call.1} parent=11 // pred_check
          %p192 = pneg %p107
        $region14: #{tpu_custom_call.1} parent=11 // pred_check_branch
          %194 = sbr.rel (%p192) target = $region16
        $region15: #{tpu_custom_call.1} parent=11 // pred_region
          _
        $region16: #{tpu_custom_call.1} parent=11 // pred_fallthru
          _
        // Predicated region
        $region17: #{tpu_custom_call.1} parent=11 // pred_check
          %p195 = pneg %p128
        $region18: #{tpu_custom_call.1} parent=11 // pred_check_branch
          %197 = sbr.rel (%p195) target = $region20
        $region19: #{tpu_custom_call.1} parent=11 // pred_region
          _
        $region20: #{tpu_custom_call.1} parent=11 // pred_fallthru
          _
        // Predicated region
        $region21: #{tpu_custom_call.1} parent=11 // pred_check
          %p198 = pneg %p149
        $region22: #{tpu_custom_call.1} parent=11 // pred_check_branch
          %200 = sbr.rel (%p198) target = $region24
        $region23: #{tpu_custom_call.1} parent=11 // pred_region
          _
        $region24: #{tpu_custom_call.1} parent=11 // pred_fallthru
          _
      $region12: #{tpu_custom_call.1} parent=5 // pred_fallthru
        _
      %p201 = scmp.lt.s32.totalorder %s14, 4
      // Predicated region
      $region25: #{tpu_custom_call.1} parent=5 // pred_check
        %p202 = pneg %p201
      $region26: #{tpu_custom_call.1} parent=5 // pred_check_branch
        %204 = sbr.rel (%p202) target = $region28
      $region27: #{tpu_custom_call.1} parent=5 // pred_region
        // Predicated region
        $region29: #{tpu_custom_call.1} parent=27 // pred_check
          %p205 = pneg %p48
        $region30: #{tpu_custom_call.1} parent=27 // pred_check_branch
          %207 = sbr.rel (%p205) target = $region32
        $region31: #{tpu_custom_call.1} parent=27 // pred_region
          %s208 = smul.u32 8, %s22
          %s209 = ssub.s32 18, %s208
          %p210 = scmp.lt.s32.totalorder %s209, 8
          %s211 = scalar_select %p210, %s209, 8
          %s212 = smul.u32 4, %s211
          %s213 = smul.u32 %s212, 3
          %p214 = scmp.lt.s32.totalorder %s21, 1
          %s215 = scalar_select %p214, %s21, 1
          %p216 = scmp.lt.s32.totalorder %s208, 17
          %s217 = scalar_select %p216, %s208, 17
          %s218 = smul.addr %s217, 3
          %s219 = smul.addr %s215, 54
          %s220 = sadd.s32 %s218, %s219
          %s221 = smul.addr %s220, 4
          %s222 = scalar_lea.vmem %s0, %s221
          %s223 = smul.u32 8, %s22
          %s224 = ssub.s32 18, %s223
          %p225 = scmp.lt.s32.totalorder %s224, 8
          %s226 = scalar_select %p225, %s224, 8
          %s227 = smul.u32 4, %s226
          %s228 = smul.u32 %s227, 3
        $region32: #{tpu_custom_call.1} parent=27 // pred_fallthru
          _
        // Predicated region
        $region33: #{tpu_custom_call.1} parent=27 // pred_check
          %p229 = pneg %p80
        $region34: #{tpu_custom_call.1} parent=27 // pred_check_branch
          %231 = sbr.rel (%p229) target = $region36
        $region35: #{tpu_custom_call.1} parent=27 // pred_region
          %s232 = sadd.s32 %s22, 1
          %s233 = smul.u32 %s232, 4
          %s234 = smul.u32 2, %s233
          %p235 = scmp.lt.s32.totalorder %s21, 1
          %s236 = scalar_select %p235, %s21, 1
          %p237 = scmp.lt.s32.totalorder %s234, 17
          %s238 = scalar_select %p237, %s234, 17
          %s239 = smul.addr %s238, 3
          %s240 = smul.addr %s236, 54
          %s241 = sadd.s32 %s239, %s240
          %s242 = smul.addr %s241, 4
          %s243 = scalar_lea.vmem %s1, %s242
          %s244 = sadd.s32 %s22, 1
          %s245 = smul.u32 %s244, 4
          %s246 = smul.u32 2, %s245
        $region36: #{tpu_custom_call.1} parent=27 // pred_fallthru
          _
      $region28: #{tpu_custom_call.1} parent=5 // pred_fallthru
        _
      %p247 = scmp.le.s32.totalorder 1, %s14
      %p248 = scmp.lt.s32.totalorder %s14, 5
      %p249 = pnand %p247, %p248
      %p250 = pneg %p249
      // Predicated region
      $region37: #{tpu_custom_call.1} parent=5 // pred_check
        _
      $region38: #{tpu_custom_call.1} parent=5 // pred_check_branch
        %252 = sbr.rel (%p249) target = $region40
      $region39: #{tpu_custom_call.1} parent=5 // pred_region
        %s253 = ssub.s32 %s14, 1
        %s254 = smul.u32 8, %s24
        %s255 = ssub.s32 18, %s254
        %p256 = scmp.lt.s32.totalorder %s255, 8
        %s257 = scalar_select %p256, %s255, 8
        %s258 = smul.u32 4, %s257
        %s259 = smul.u32 %s258, 3
        %p260 = scmp.lt.s32.totalorder %s23, 1
        %s261 = scalar_select %p260, %s23, 1
        %p262 = scmp.lt.s32.totalorder %s254, 17
        %s263 = scalar_select %p262, %s254, 17
        %s264 = smul.addr %s263, 3
        %s265 = smul.addr %s261, 54
        %s266 = sadd.s32 %s264, %s265
        %s267 = smul.addr %s266, 4
        %s268 = scalar_lea.vmem %s0, %s267
        %p269 = pneg %p54
        %p270 = pneg %p51
        %s271 = sadd.s32 %s24, 1
        %s272 = smul.u32 %s271, 4
        %s273 = smul.u32 2, %s272
        %p274 = scmp.lt.s32.totalorder %s23, 1
        %s275 = scalar_select %p274, %s23, 1
        %p276 = scmp.lt.s32.totalorder %s273, 17
        %s277 = scalar_select %p276, %s273, 17
        %s278 = smul.addr %s277, 3
        %s279 = smul.addr %s275, 54
        %s280 = sadd.s32 %s278, %s279
        %s281 = smul.addr %s280, 4
        %s282 = scalar_lea.vmem %s1, %s281
        %p283 = pneg %p86
        %p284 = pneg %p83
        %p285 = pneg %p107
        %p286 = pneg %p104
        %p287 = pneg %p128
        %p288 = pneg %p125
        %p289 = pneg %p149
        %p290 = pneg %p146
        %p291 = pneg %p177
        %p292 = pneg %p174
        %s293 = sand.u32 %s164, 1
        %s294 = scalar_lea.sflag [#allocation3], %s293
        %s295 = sand.u32 %s164, 1
        %s296 = smul.addr %s295, 64
        %s297 = scalar_lea.vmem [#allocation2], %s296
        %s298 = smul.u32 8, %s24
        %s299 = ssub.s32 18, %s298
        %p300 = scmp.lt.s32.totalorder %s299, 8
        %s301 = scalar_select %p300, %s299, 8
        %s302 = smul.u32 4, %s301
        %s303 = smul.u32 %s302, 3
        %p304 = scmp.lt.s32.totalorder %s23, 1
        %s305 = scalar_select %p304, %s23, 1
        %p306 = scmp.lt.s32.totalorder %s298, 17
        %s307 = scalar_select %p306, %s298, 17
        %s308 = smul.addr %s307, 3
        %s309 = smul.addr %s305, 54
        %s310 = sadd.s32 %s308, %s309
        %s311 = smul.addr %s310, 4
        %s312 = scalar_lea.vmem %s0, %s311
        %s313 = smul.u32 8, %s24
        %s314 = ssub.s32 18, %s313
        %p315 = scmp.lt.s32.totalorder %s314, 8
        %s316 = scalar_select %p315, %s314, 8
        %s317 = smul.u32 4, %s316
        %s318 = smul.u32 %s317, 3
        %s319 = sadd.s32 %s24, 1
        %s320 = smul.u32 %s319, 4
        %s321 = smul.u32 2, %s320
        %p322 = scmp.lt.s32.totalorder %s23, 1
        %s323 = scalar_select %p322, %s23, 1
        %p324 = scmp.lt.s32.totalorder %s321, 17
        %s325 = scalar_select %p324, %s321, 17
        %s326 = smul.addr %s325, 3
        %s327 = smul.addr %s323, 54
        %s328 = sadd.s32 %s326, %s327
        %s329 = smul.addr %s328, 4
        %s330 = scalar_lea.vmem %s1, %s329
        %s331 = sadd.s32 %s24, 1
        %s332 = smul.u32 %s331, 4
        %s333 = smul.u32 2, %s332
        %s334 = smul.u32 8, %s24
        %v336 = vld [vmem:[%s312] sm:$0xf]
        %v337 = vld [vmem:[%s312 + $0x4] sm:$0xf]
        %v338 = vld [vmem:[%s312 + $0x8] sm:$0x1]
        %v339 = vld [vmem:[%s312 + $0xc] sm:$0xf]
        %v340 = vld [vmem:[%s312 + $0x10] sm:$0xf]
        %v341 = vld [vmem:[%s312 + $0x14] sm:$0x1]
        %v342 = vld [vmem:[%s312 + $0x18] sm:$0xf]
        %v343 = vld [vmem:[%s312 + $0x1c] sm:$0xf]
        %v344 = vld [vmem:[%s312 + $0x20] sm:$0x1]
        %v345 = vld [vmem:[%s312 + $0x24] sm:$0xf]
        %v346 = vld [vmem:[%s312 + $0x28] sm:$0xf]
        %v347 = vld [vmem:[%s312 + $0x2c] sm:$0x1]
        %v348 = vld [vmem:[%s312 + $0x30] sm:$0xf]
        %v349 = vld [vmem:[%s312 + $0x34] sm:$0xf]
        %v350 = vld [vmem:[%s312 + $0x38] sm:$0x1]
        %v351 = vld [vmem:[%s312 + $0x3c] sm:$0xf]
        %v352 = vld [vmem:[%s312 + $0x40] sm:$0xf]
        %v353 = vld [vmem:[%s312 + $0x44] sm:$0x1]
        %v354 = vld [vmem:[%s312 + $0x48] sm:$0xf]
        %v355 = vld [vmem:[%s312 + $0x4c] sm:$0xf]
        %v356 = vld [vmem:[%s312 + $0x50] sm:$0x1]
        %v357 = vld [vmem:[%s312 + $0x54] sm:$0xf]
        %v358 = vld [vmem:[%s312 + $0x58] sm:$0xf]
        %v359 = vld [vmem:[%s312 + $0x5c] sm:$0x1]
        %v360 = vld [vmem:[%s330] sm:$0xf]
        %v361 = vld [vmem:[%s330 + $0x4] sm:$0xf]
        %v362 = vld [vmem:[%s330 + $0x8] sm:$0x1]
        %v363 = vld [vmem:[%s330 + $0xc] sm:$0xf]
        %v364 = vld [vmem:[%s330 + $0x10] sm:$0xf]
        %v365 = vld [vmem:[%s330 + $0x14] sm:$0x1]
        %v382 = vunpack.c.l.b16 %v336
        %v383 = vunpack.c.l.b16 %v337
        %v384 = vunpack.c.l.b16 %v339
        %v385 = vunpack.c.l.b16 %v340
        %v386 = vunpack.c.l.b16 %v342
        %v387 = vunpack.c.l.b16 %v343
        %v388 = vunpack.c.l.b16 %v345
        %v389 = vunpack.c.l.b16 %v346
        %v390 = vunpack.c.l.b16 %v348
        %v391 = vunpack.c.l.b16 %v349
        %v392 = vunpack.c.l.b16 %v351
        %v393 = vunpack.c.l.b16 %v352
        %v394 = vunpack.c.l.b16 %v354
        %v395 = vunpack.c.l.b16 %v355
        %v396 = vunpack.c.l.b16 %v357
        %v397 = vunpack.c.l.b16 %v358
        %v398 = vpack.c.b16 %v383, %v382
        %v399 = vpack.c.b16 %v385, %v384
        %v400 = vpack.c.b16 %v387, %v386
        %v401 = vpack.c.b16 %v389, %v388
        %v402 = vpack.c.b16 %v391, %v390
        %v403 = vpack.c.b16 %v393, %v392
        %v404 = vpack.c.b16 %v395, %v394
        %v405 = vpack.c.b16 %v397, %v396
        %v414 = vunpack.c.l.b16 %v338
        %v415 = vunpack.c.l.b16 %v341
        %v416 = vunpack.c.l.b16 %v344
        %v417 = vunpack.c.l.b16 %v347
        %v418 = vunpack.c.l.b16 %v350
        %v419 = vunpack.c.l.b16 %v353
        %v420 = vunpack.c.l.b16 %v356
        %v421 = vunpack.c.l.b16 %v359
        %v422 = vpack.c.b16 %v414, %v414
        %v423 = vpack.c.b16 %v415, %v415
        %v424 = vpack.c.b16 %v416, %v416
        %v425 = vpack.c.b16 %v417, %v417
        %v426 = vpack.c.b16 %v418, %v418
        %v427 = vpack.c.b16 %v419, %v419
        %v428 = vpack.c.b16 %v420, %v420
        %v429 = vpack.c.b16 %v421, %v421
        %vm430 = vsmask.f32 7424
        %v432 = vshrl.u32 %v398, 16
        %v434 = vshll.u32 %v398, 16
        %v436 = vrot.slane %v434, 1
        %v437 = vor.u32 %v432, %v436
        %v439 = vshll.u32 %v422, 16
        %v441 = vrot.slane %v439, 1
        %v442 = vsel %vm430, %v437, %v441
        %v444 = vshrl.u32 %v399, 16
        %v446 = vshll.u32 %v399, 16
        %v448 = vrot.slane %v446, 1
        %v449 = vor.u32 %v444, %v448
        %v451 = vshll.u32 %v423, 16
        %v453 = vrot.slane %v451, 1
        %v454 = vsel %vm430, %v449, %v453
        %v456 = vshrl.u32 %v400, 16
        %v458 = vshll.u32 %v400, 16
        %v460 = vrot.slane %v458, 1
        %v461 = vor.u32 %v456, %v460
        %v463 = vshll.u32 %v424, 16
        %v465 = vrot.slane %v463, 1
        %v466 = vsel %vm430, %v461, %v465
        %v468 = vshrl.u32 %v401, 16
        %v470 = vshll.u32 %v401, 16
        %v472 = vrot.slane %v470, 1
        %v473 = vor.u32 %v468, %v472
        %v475 = vshll.u32 %v425, 16
        %v477 = vrot.slane %v475, 1
        %v478 = vsel %vm430, %v473, %v477
        %v480 = vshrl.u32 %v402, 16
        %v482 = vshll.u32 %v402, 16
        %v484 = vrot.slane %v482, 1
        %v485 = vor.u32 %v480, %v484
        %v487 = vshll.u32 %v426, 16
        %v489 = vrot.slane %v487, 1
        %v490 = vsel %vm430, %v485, %v489
        %v492 = vshrl.u32 %v403, 16
        %v494 = vshll.u32 %v403, 16
        %v496 = vrot.slane %v494, 1
        %v497 = vor.u32 %v492, %v496
        %v499 = vshll.u32 %v427, 16
        %v501 = vrot.slane %v499, 1
        %v502 = vsel %vm430, %v497, %v501
        %v504 = vshrl.u32 %v404, 16
        %v506 = vshll.u32 %v404, 16
        %v508 = vrot.slane %v506, 1
        %v509 = vor.u32 %v504, %v508
        %v511 = vshll.u32 %v428, 16
        %v513 = vrot.slane %v511, 1
        %v514 = vsel %vm430, %v509, %v513
        %v516 = vshrl.u32 %v405, 16
        %v518 = vshll.u32 %v405, 16
        %v520 = vrot.slane %v518, 1
        %v521 = vor.u32 %v516, %v520
        %v523 = vshll.u32 %v429, 16
        %v525 = vrot.slane %v523, 1
        %v526 = vsel %vm430, %v521, %v525
        %527 = vrot.lane.b32.xlu0 %v442, 4
        %v528 = vpop.permute.xlu0 %527
        %529 = vrot.lane.b32.xlu0 %v454, 4
        %v530 = vpop.permute.xlu0 %529
        %531 = vrot.lane.b32.xlu0 %v466, 4
        %v532 = vpop.permute.xlu0 %531
        %533 = vrot.lane.b32.xlu0 %v478, 4
        %v534 = vpop.permute.xlu0 %533
        %535 = vrot.lane.b32.xlu0 %v490, 4
        %v536 = vpop.permute.xlu0 %535
        %537 = vrot.lane.b32.xlu0 %v502, 4
        %v538 = vpop.permute.xlu0 %537
        %539 = vrot.lane.b32.xlu0 %v514, 4
        %v540 = vpop.permute.xlu0 %539
        %541 = vrot.lane.b32.xlu0 %v526, 4
        %v542 = vpop.permute.xlu0 %541
        %vm543 = vcmask 1046528
        %v544 = vrot.slane %v398, 1
        %v545 = vrot.slane %v422, 1
        %v546 = vsel %vm543, %v544, %v545
        %v547 = vrot.slane %v399, 1
        %v548 = vrot.slane %v423, 1
        %v549 = vsel %vm543, %v547, %v548
        %v550 = vrot.slane %v400, 1
        %v551 = vrot.slane %v424, 1
        %v552 = vsel %vm543, %v550, %v551
        %v553 = vrot.slane %v401, 1
        %v554 = vrot.slane %v425, 1
        %v555 = vsel %vm543, %v553, %v554
        %v556 = vrot.slane %v402, 1
        %v557 = vrot.slane %v426, 1
        %v558 = vsel %vm543, %v556, %v557
        %v559 = vrot.slane %v403, 1
        %v560 = vrot.slane %v427, 1
        %v561 = vsel %vm543, %v559, %v560
        %v562 = vrot.slane %v404, 1
        %v563 = vrot.slane %v428, 1
        %v564 = vsel %vm543, %v562, %v563
        %v565 = vrot.slane %v405, 1
        %v566 = vrot.slane %v429, 1
        %v567 = vsel %vm543, %v565, %v566
        %568 = vrot.lane.b32.xlu0 %v546, 8
        %v569 = vpop.permute.xlu0 %568
        %570 = vrot.lane.b32.xlu0 %v549, 8
        %v571 = vpop.permute.xlu0 %570
        %572 = vrot.lane.b32.xlu0 %v552, 8
        %v573 = vpop.permute.xlu0 %572
        %574 = vrot.lane.b32.xlu0 %v555, 8
        %v575 = vpop.permute.xlu0 %574
        %576 = vrot.lane.b32.xlu0 %v558, 8
        %v577 = vpop.permute.xlu0 %576
        %578 = vrot.lane.b32.xlu0 %v561, 8
        %v579 = vpop.permute.xlu0 %578
        %580 = vrot.lane.b32.xlu0 %v564, 8
        %v581 = vpop.permute.xlu0 %580
        %582 = vrot.lane.b32.xlu0 %v567, 8
        %v583 = vpop.permute.xlu0 %582
        %v586 = vunpack.c.l.b16 %v360
        %v587 = vunpack.c.l.b16 %v361
        %v588 = vpack.c.b16 %v587, %v586
        %589 = vrot.lane.b32.xlu0 %v399, 12
        %v590 = vpop.permute.xlu0 %589
        %591 = vrot.lane.b32.xlu0 %v400, 12
        %v592 = vpop.permute.xlu0 %591
        %593 = vrot.lane.b32.xlu0 %v401, 12
        %v594 = vpop.permute.xlu0 %593
        %595 = vrot.lane.b32.xlu0 %v402, 12
        %v596 = vpop.permute.xlu0 %595
        %597 = vrot.lane.b32.xlu0 %v403, 12
        %v598 = vpop.permute.xlu0 %597
        %599 = vrot.lane.b32.xlu0 %v404, 12
        %v600 = vpop.permute.xlu0 %599
        %601 = vrot.lane.b32.xlu0 %v405, 12
        %v602 = vpop.permute.xlu0 %601
        %603 = vrot.lane.b32.xlu0 %v588, 12
        %v604 = vpop.permute.xlu0 %603
        %v606 = vunpack.c.l.b16 %v362
        %v607 = vpack.c.b16 %v606, %v606
        %v609 = vshrl.u32 %v588, 16
        %v611 = vshll.u32 %v588, 16
        %v613 = vrot.slane %v611, 1
        %v614 = vor.u32 %v609, %v613
        %v616 = vshll.u32 %v607, 16
        %v618 = vrot.slane %v616, 1
        %v619 = vsel %vm430, %v614, %v618
        %620 = vrot.lane.b32.xlu0 %v454, 16
        %v621 = vpop.permute.xlu0 %620
        %622 = vrot.lane.b32.xlu0 %v466, 16
        %v623 = vpop.permute.xlu0 %622
        %624 = vrot.lane.b32.xlu0 %v478, 16
        %v625 = vpop.permute.xlu0 %624
        %626 = vrot.lane.b32.xlu0 %v490, 16
        %v627 = vpop.permute.xlu0 %626
        %628 = vrot.lane.b32.xlu0 %v502, 16
        %v629 = vpop.permute.xlu0 %628
        %630 = vrot.lane.b32.xlu0 %v514, 16
        %v631 = vpop.permute.xlu0 %630
        %632 = vrot.lane.b32.xlu0 %v526, 16
        %v633 = vpop.permute.xlu0 %632
        %634 = vrot.lane.b32.xlu0 %v619, 16
        %v635 = vpop.permute.xlu0 %634
        %v636 = vrot.slane %v588, 1
        %v637 = vrot.slane %v607, 1
        %v638 = vsel %vm543, %v636, %v637
        %639 = vrot.lane.b32.xlu0 %v549, 20
        %v640 = vpop.permute.xlu0 %639
        %641 = vrot.lane.b32.xlu0 %v552, 20
        %v642 = vpop.permute.xlu0 %641
        %643 = vrot.lane.b32.xlu0 %v555, 20
        %v644 = vpop.permute.xlu0 %643
        %645 = vrot.lane.b32.xlu0 %v558, 20
        %v646 = vpop.permute.xlu0 %645
        %647 = vrot.lane.b32.xlu0 %v561, 20
        %v648 = vpop.permute.xlu0 %647
        %649 = vrot.lane.b32.xlu0 %v564, 20
        %v650 = vpop.permute.xlu0 %649
        %651 = vrot.lane.b32.xlu0 %v567, 20
        %v652 = vpop.permute.xlu0 %651
        %653 = vrot.lane.b32.xlu0 %v638, 20
        %v654 = vpop.permute.xlu0 %653
        %v657 = vunpack.c.l.b16 %v363
        %v658 = vunpack.c.l.b16 %v364
        %v659 = vpack.c.b16 %v658, %v657
        %660 = vrot.lane.b32.xlu0 %v400, 24
        %v661 = vpop.permute.xlu0 %660
        %662 = vrot.lane.b32.xlu0 %v401, 24
        %v663 = vpop.permute.xlu0 %662
        %664 = vrot.lane.b32.xlu0 %v402, 24
        %v665 = vpop.permute.xlu0 %664
        %666 = vrot.lane.b32.xlu0 %v403, 24
        %v667 = vpop.permute.xlu0 %666
        %668 = vrot.lane.b32.xlu0 %v404, 24
        %v669 = vpop.permute.xlu0 %668
        %670 = vrot.lane.b32.xlu0 %v405, 24
        %v671 = vpop.permute.xlu0 %670
        %672 = vrot.lane.b32.xlu0 %v588, 24
        %v673 = vpop.permute.xlu0 %672
        %674 = vrot.lane.b32.xlu0 %v659, 24
        %v675 = vpop.permute.xlu0 %674
        %v677 = vunpack.c.l.b16 %v365
        %v678 = vpack.c.b16 %v677, %v677
        %v680 = vshrl.u32 %v659, 16
        %v682 = vshll.u32 %v659, 16
        %v684 = vrot.slane %v682, 1
        %v685 = vor.u32 %v680, %v684
        %v687 = vshll.u32 %v678, 16
        %v689 = vrot.slane %v687, 1
        %v690 = vsel %vm430, %v685, %v689
        %691 = vrot.lane.b32.xlu0 %v466, 28
        %v692 = vpop.permute.xlu0 %691
        %693 = vrot.lane.b32.xlu0 %v478, 28
        %v694 = vpop.permute.xlu0 %693
        %695 = vrot.lane.b32.xlu0 %v490, 28
        %v696 = vpop.permute.xlu0 %695
        %697 = vrot.lane.b32.xlu0 %v502, 28
        %v698 = vpop.permute.xlu0 %697
        %699 = vrot.lane.b32.xlu0 %v514, 28
        %v700 = vpop.permute.xlu0 %699
        %701 = vrot.lane.b32.xlu0 %v526, 28
        %v702 = vpop.permute.xlu0 %701
        %703 = vrot.lane.b32.xlu0 %v619, 28
        %v704 = vpop.permute.xlu0 %703
        %705 = vrot.lane.b32.xlu0 %v690, 28
        %v706 = vpop.permute.xlu0 %705
        %v707 = vrot.slane %v659, 1
        %v708 = vrot.slane %v678, 1
        %v709 = vsel %vm543, %v707, %v708
        %710 = vrot.lane.b32.xlu0 %v552, 32
        %v711 = vpop.permute.xlu0 %710
        %712 = vrot.lane.b32.xlu0 %v555, 32
        %v713 = vpop.permute.xlu0 %712
        %714 = vrot.lane.b32.xlu0 %v558, 32
        %v715 = vpop.permute.xlu0 %714
        %716 = vrot.lane.b32.xlu0 %v561, 32
        %v717 = vpop.permute.xlu0 %716
        %718 = vrot.lane.b32.xlu0 %v564, 32
        %v719 = vpop.permute.xlu0 %718
        %720 = vrot.lane.b32.xlu0 %v567, 32
        %v721 = vpop.permute.xlu0 %720
        %722 = vrot.lane.b32.xlu0 %v638, 32
        %v723 = vpop.permute.xlu0 %722
        %724 = vrot.lane.b32.xlu0 %v709, 32
        %v725 = vpop.permute.xlu0 %724
        %vm726 = vcmask 31744
        %v728 = vsel %vm726, %v398, %v528
        %v730 = vsel %vm726, %v399, %v530
        %v732 = vsel %vm726, %v400, %v532
        %v734 = vsel %vm726, %v401, %v534
        %v736 = vsel %vm726, %v402, %v536
        %v738 = vsel %vm726, %v403, %v538
        %v740 = vsel %vm726, %v404, %v540
        %v742 = vsel %vm726, %v405, %v542
        %vm743 = vcmask 64512
        %v745 = vsel %vm743, %v728, %v569
        %v747 = vsel %vm743, %v730, %v571
        %v749 = vsel %vm743, %v732, %v573
        %v751 = vsel %vm743, %v734, %v575
        %v753 = vsel %vm743, %v736, %v577
        %v755 = vsel %vm743, %v738, %v579
        %v757 = vsel %vm743, %v740, %v581
        %v759 = vsel %vm743, %v742, %v583
        %vm760 = vcmask 97280
        %v762 = vsel %vm760, %v745, %v590
        %v764 = vsel %vm760, %v747, %v592
        %v766 = vsel %vm760, %v749, %v594
        %v768 = vsel %vm760, %v751, %v596
        %v770 = vsel %vm760, %v753, %v598
        %v772 = vsel %vm760, %v755, %v600
        %v774 = vsel %vm760, %v757, %v602
        %v776 = vsel %vm760, %v759, %v604
        %vm777 = vcmask 130048
        %v779 = vsel %vm777, %v762, %v621
        %v781 = vsel %vm777, %v764, %v623
        %v783 = vsel %vm777, %v766, %v625
        %v785 = vsel %vm777, %v768, %v627
        %v787 = vsel %vm777, %v770, %v629
        %v789 = vsel %vm777, %v772, %v631
        %v791 = vsel %vm777, %v774, %v633
        %v793 = vsel %vm777, %v776, %v635
        %vm794 = vcmask 162816
        %v796 = vsel %vm794, %v779, %v640
        %v798 = vsel %vm794, %v781, %v642
        %v800 = vsel %vm794, %v783, %v644
        %v802 = vsel %vm794, %v785, %v646
        %v804 = vsel %vm794, %v787, %v648
        %v806 = vsel %vm794, %v789, %v650
        %v808 = vsel %vm794, %v791, %v652
        %v810 = vsel %vm794, %v793, %v654
        %vm811 = vcmask 195584
        %v813 = vsel %vm811, %v796, %v661
        %v815 = vsel %vm811, %v798, %v663
        %v817 = vsel %vm811, %v800, %v665
        %v819 = vsel %vm811, %v802, %v667
        %v821 = vsel %vm811, %v804, %v669
        %v823 = vsel %vm811, %v806, %v671
        %v825 = vsel %vm811, %v808, %v673
        %v827 = vsel %vm811, %v810, %v675
        %vm828 = vcmask 228352
        %v830 = vsel %vm828, %v813, %v692
        %v832 = vsel %vm828, %v815, %v694
        %v834 = vsel %vm828, %v817, %v696
        %v836 = vsel %vm828, %v819, %v698
        %v838 = vsel %vm828, %v821, %v700
        %v840 = vsel %vm828, %v823, %v702
        %v842 = vsel %vm828, %v825, %v704
        %v844 = vsel %vm828, %v827, %v706
        %vm845 = vcmask 261120
        %v847 = vsel %vm845, %v830, %v711
        %v849 = vsel %vm845, %v832, %v713
        %v851 = vsel %vm845, %v834, %v715
        %v853 = vsel %vm845, %v836, %v717
        %v855 = vsel %vm845, %v838, %v719
        %v857 = vsel %vm845, %v840, %v721
        %v859 = vsel %vm845, %v842, %v723
        %v861 = vsel %vm845, %v844, %v725
        %v862 = vld [vmem:[%s2] sm:$0xf]
        %v863 = vld [vmem:[%s2 + $0x4] sm:$0xf]
        %v864 = vld [vmem:[%s2 + $0x8] sm:$0xf]
        %v865 = vld [vmem:[%s2 + $0xc] sm:$0xf]
        %v866 = vld [vmem:[%s2 + $0x10] sm:$0x3]
        %v867 = vld [vmem:[%s3] sm:$0x1]
        %v869 = vperm.slane %v867, 0
        %v876 = vunpack.c.l.b16 %v862
        %v877 = vunpack.c.l.b16 %v863
        %v878 = vunpack.c.l.b16 %v864
        %v879 = vunpack.c.l.b16 %v865
        %v880 = vunpack.c.l.b16 %v866
        %v881 = vpack.c.b16 %v877, %v876
        %v882 = vpack.c.b16 %v879, %v878
        %v883 = vpack.c.b16 %v880, %v880
        %vm886 = vcmask 293888
        %v887 = vsel %vm886, %v847, 0
        %v889 = vsel %vm886, %v849, 0
        %v891 = vsel %vm886, %v851, 0
        %v893 = vsel %vm886, %v853, 0
        %v895 = vsel %vm886, %v855, 0
        %v897 = vsel %vm886, %v857, 0
        %v899 = vsel %vm886, %v859, 0
        %v901 = vsel %vm886, %v861, 0
        %vm903 = vcmask 1041408
        %v905 = vsel %vm903, %v883, 0
        %907 = vmatpush.bf16.msra.mxu0 0
        %908 = vmatpush.bf16.msra.mxu0 0
        %909 = vmatpush.bf16.msra.mxu0 0
        %910 = vmatpush.bf16.msra.mxu0 0
        %911 = vmatpush.bf16.msra.mxu0 0
        %912 = vmatpush.bf16.msra.mxu0 %v905
        %913 = vmatpush.bf16.msra.mxu0 %v882
        %914 = vmatpush.bf16.msra.mxu0 %v881
        %915 = vmatmul.bf16.gmra.mxu0 %v887
        %v916 = vpop.f32.mrf.mxu0
        %v917 = vadd.f32 %v869, %v916
        %v918 = vpop.f32.mrf.mxu0
        %v919 = vadd.f32 %v869, %v918
        %920 = vmatmul.bf16.gmra.mxu0 %v889
        %v921 = vpop.f32.mrf.mxu0
        %v922 = vadd.f32 %v869, %v921
        %v923 = vpop.f32.mrf.mxu0
        %v924 = vadd.f32 %v869, %v923
        %925 = vmatmul.bf16.gmra.mxu0 %v891
        %v926 = vpop.f32.mrf.mxu0
        %v927 = vadd.f32 %v869, %v926
        %v928 = vpop.f32.mrf.mxu0
        %v929 = vadd.f32 %v869, %v928
        %930 = vmatmul.bf16.gmra.mxu0 %v893
        %v931 = vpop.f32.mrf.mxu0
        %v932 = vadd.f32 %v869, %v931
        %v933 = vpop.f32.mrf.mxu0
        %v934 = vadd.f32 %v869, %v933
        %935 = vmatmul.bf16.gmra.mxu0 %v895
        %v936 = vpop.f32.mrf.mxu0
        %v937 = vadd.f32 %v869, %v936
        %v938 = vpop.f32.mrf.mxu0
        %v939 = vadd.f32 %v869, %v938
        %940 = vmatmul.bf16.gmra.mxu0 %v897
        %v941 = vpop.f32.mrf.mxu0
        %v942 = vadd.f32 %v869, %v941
        %v943 = vpop.f32.mrf.mxu0
        %v944 = vadd.f32 %v869, %v943
        %945 = vmatmul.bf16.gmra.mxu0 %v899
        %v946 = vpop.f32.mrf.mxu0
        %v947 = vadd.f32 %v869, %v946
        %v948 = vpop.f32.mrf.mxu0
        %v949 = vadd.f32 %v869, %v948
        %950 = vmatmul.bf16.gmra.mxu0 %v901
        %v951 = vpop.f32.mrf.mxu0
        %v952 = vadd.f32 %v869, %v951
        %v953 = vpop.f32.mrf.mxu0
        %v954 = vadd.f32 %v869, %v953
        %955 = vdwg.mxu0
        %vm956 = vcmp.gt.f32.partialorder %v917, 0.0
        %vm957 = vcmp.gt.f32.partialorder %v919, 0.0
        %vm958 = vcmp.gt.f32.partialorder %v922, 0.0
        %vm959 = vcmp.gt.f32.partialorder %v924, 0.0
        %vm960 = vcmp.gt.f32.partialorder %v927, 0.0
        %vm961 = vcmp.gt.f32.partialorder %v929, 0.0
        %vm962 = vcmp.gt.f32.partialorder %v932, 0.0
        %vm963 = vcmp.gt.f32.partialorder %v934, 0.0
        %vm964 = vcmp.gt.f32.partialorder %v937, 0.0
        %vm965 = vcmp.gt.f32.partialorder %v939, 0.0
        %vm966 = vcmp.gt.f32.partialorder %v942, 0.0
        %vm967 = vcmp.gt.f32.partialorder %v944, 0.0
        %vm968 = vcmp.gt.f32.partialorder %v947, 0.0
        %vm969 = vcmp.gt.f32.partialorder %v949, 0.0
        %vm970 = vcmp.gt.f32.partialorder %v952, 0.0
        %vm971 = vcmp.gt.f32.partialorder %v954, 0.0
        %v972 = vld [vmem:[%s4] sm:$0x1]
        %v974 = vperm.slane %v972, 0
        %v976 = vmul.f32 %v917, %v974
        %v977 = vmul.f32 %v919, %v974
        %v978 = vmul.f32 %v922, %v974
        %v979 = vmul.f32 %v924, %v974
        %v980 = vmul.f32 %v927, %v974
        %v981 = vmul.f32 %v929, %v974
        %v982 = vmul.f32 %v932, %v974
        %v983 = vmul.f32 %v934, %v974
        %v984 = vmul.f32 %v937, %v974
        %v985 = vmul.f32 %v939, %v974
        %v986 = vmul.f32 %v942, %v974
        %v987 = vmul.f32 %v944, %v974
        %v988 = vmul.f32 %v947, %v974
        %v989 = vmul.f32 %v949, %v974
        %v990 = vmul.f32 %v952, %v974
        %v991 = vmul.f32 %v954, %v974
        %v992 = vsel %vm956, %v917, %v976
        %v993 = vsel %vm957, %v919, %v977
        %v994 = vsel %vm958, %v922, %v978
        %v995 = vsel %vm959, %v924, %v979
        %v996 = vsel %vm960, %v927, %v980
        %v997 = vsel %vm961, %v929, %v981
        %v998 = vsel %vm962, %v932, %v982
        %v999 = vsel %vm963, %v934, %v983
        %v1000 = vsel %vm964, %v937, %v984
        %v1001 = vsel %vm965, %v939, %v985
        %v1002 = vsel %vm966, %v942, %v986
        %v1003 = vsel %vm967, %v944, %v987
        %v1004 = vsel %vm968, %v947, %v988
        %v1005 = vsel %vm969, %v949, %v989
        %v1006 = vsel %vm970, %v952, %v990
        %v1007 = vsel %vm971, %v954, %v991
        %v1008 = vpack.c.bf16 %v992, %v992
        %v1009 = vpack.c.bf16 %v993, %v993
        %v1010 = vpack.c.bf16 %v994, %v994
        %v1011 = vpack.c.bf16 %v995, %v995
        %v1012 = vpack.c.bf16 %v996, %v996
        %v1013 = vpack.c.bf16 %v997, %v997
        %v1014 = vpack.c.bf16 %v998, %v998
        %v1015 = vpack.c.bf16 %v999, %v999
        %v1016 = vpack.c.bf16 %v1000, %v1000
        %v1017 = vpack.c.bf16 %v1001, %v1001
        %v1018 = vpack.c.bf16 %v1002, %v1002
        %v1019 = vpack.c.bf16 %v1003, %v1003
        %v1020 = vpack.c.bf16 %v1004, %v1004
        %v1021 = vpack.c.bf16 %v1005, %v1005
        %v1022 = vpack.c.bf16 %v1006, %v1006
        %v1023 = vpack.c.bf16 %v1007, %v1007
        %vm1024 = vcmask 125952
        %1025 = vst.msk [vmem:[%s297] sm:$0xf] %vm1024, %v1008
        %1026 = vst.msk [vmem:[%s297 + $0x4] sm:$0xf] %vm1024, %v1009
        %1027 = vst.msk [vmem:[%s297 + $0x8] sm:$0xf] %vm1024, %v1010
        %1028 = vst.msk [vmem:[%s297 + $0xc] sm:$0xf] %vm1024, %v1011
        %1029 = vst.msk [vmem:[%s297 + $0x10] sm:$0xf] %vm1024, %v1012
        %1030 = vst.msk [vmem:[%s297 + $0x14] sm:$0xf] %vm1024, %v1013
        %1031 = vst.msk [vmem:[%s297 + $0x18] sm:$0xf] %vm1024, %v1014
        %1032 = vst.msk [vmem:[%s297 + $0x1c] sm:$0xf] %vm1024, %v1015
        %1033 = vst.msk [vmem:[%s297 + $0x20] sm:$0xf] %vm1024, %v1016
        %1034 = vst.msk [vmem:[%s297 + $0x24] sm:$0xf] %vm1024, %v1017
        %1035 = vst.msk [vmem:[%s297 + $0x28] sm:$0xf] %vm1024, %v1018
        %1036 = vst.msk [vmem:[%s297 + $0x2c] sm:$0xf] %vm1024, %v1019
        %1037 = vst.msk [vmem:[%s297 + $0x30] sm:$0xf] %vm1024, %v1020
        %1038 = vst.msk [vmem:[%s297 + $0x34] sm:$0xf] %vm1024, %v1021
        %1039 = vst.msk [vmem:[%s297 + $0x38] sm:$0xf] %vm1024, %v1022
        %1040 = vst.msk [vmem:[%s297 + $0x3c] sm:$0xf] %vm1024, %v1023
        %s1041 = sand.u32 %s164, 1
        %s1042 = scalar_lea.sflag [#allocation3], %s1041
        %s1043 = sand.u32 %s164, 1
        %s1044 = smul.addr %s1043, 64
        %s1045 = scalar_lea.vmem [#allocation2], %s1044
        // Predicated region
        $region41: #{tpu_custom_call.1} parent=39 // pred_check
          %p1046 = pneg %p174
        $region42: #{tpu_custom_call.1} parent=39 // pred_check_branch
          %1048 = sbr.rel (%p1046) target = $region44
        $region43: #{tpu_custom_call.1} parent=39 // pred_region
          %s1049 = smul.u32 8, %s24
          %1051 = vsyncadd %s1042, 0
          %s1052 = smul.addr %s1049, 2
          %s1053 = smul.addr %s23, 32
          %s1054 = sadd.s32 %s1052, %s1053
          %s1055 = smul.addr %s1054, 4
          %s1056 = scalar_lea.hbm %s5, %s1055
          %s1057 = sshll.u32 %s1045, 4
          %s1058 = int_to_ptr.vmem [resolvable:$true] %s1057
          %s1059 = sshll.u32 %s1056, 4
          %s1060 = int_to_ptr.hbm [resolvable:$true] %s1059
          %1065 = dma.vmem_to_hbm [thread:$0]  %s1058, 1024, %s1060, %s1042, 64, 64, 4
        $region44: #{tpu_custom_call.1} parent=39 // pred_fallthru
          _
      $region40: #{tpu_custom_call.1} parent=5 // pred_fallthru
        _
      %p1066 = scmp.le.s32.totalorder 2, %s14
      // Predicated region
      $region45: #{tpu_custom_call.1} parent=5 // pred_check
        %p1067 = pneg %p1066
      $region46: #{tpu_custom_call.1} parent=5 // pred_check_branch
        %1069 = sbr.rel (%p1067) target = $region48
      $region47: #{tpu_custom_call.1} parent=5 // pred_region
        %s1070 = ssub.s32 %s14, 2
        // Predicated region
        $region49: #{tpu_custom_call.1} parent=47 // pred_check
          %p1071 = pneg %p180
        $region50: #{tpu_custom_call.1} parent=47 // pred_check_branch
          %1073 = sbr.rel (%p1071) target = $region52
        $region51: #{tpu_custom_call.1} parent=47 // pred_region
          %s1074 = sand.u32 %s165, 1
          %s1075 = scalar_lea.sflag [#allocation3], %s1074
          %s1076 = sand.u32 %s165, 1
          %s1077 = smul.addr %s1076, 64
          %s1078 = scalar_lea.vmem [#allocation2], %s1077
          %1080 = dma.done %s1075, 1024
        $region52: #{tpu_custom_call.1} parent=47 // pred_fallthru
          _
      $region48: #{tpu_custom_call.1} parent=5 // pred_fallthru
        _
    $region6: #{tpu_custom_call.1} parent=1 // loop_footer
      %s18 = sadd.s32 1, %s14
    $region7: #{tpu_custom_call.1} parent=1 // loop_footer_branch
      %13 = sbr.rel target = $region3
    $region8: #{tpu_custom_call.1} parent=1 // loop_exit
      _
    %1081 = vsyncpa [#allocation3], 1
    %s1082 = scalar_lea.sflag [#allocation3], 1
    %1083 = vsyncpa %s1082, 1

</llo_original>
